<compile_context>
chip_gen: v6e
topology: v6e:2x2x1
jax: 0.10.0
libtpu: 0.0.40
codegen_flags: <defaults>
</compile_context>

<pallas_src>
import jax
import jax.numpy as jnp
from jax import lax
from jax.experimental import pallas as pl
from jax.experimental.pallas import tpu as pltpu

_MIB = 1024 * 1024
_CHUNK_ROWS = 512  # rows per in-kernel accumulation chunk (bounds live ranges)


def _tpu_hints():
    """(per-block byte budget, #TensorCores per chip) from the device kind."""
    try:
        kind = jax.devices()[0].device_kind.lower()
    except Exception:  # pragma: no cover - detection is best-effort only
        kind = ""
    if "v5" in kind or "v6" in kind:
        # 1 TensorCore, 128 MiB VMEM -> afford bigger streaming blocks.
        return 16 * _MIB, 1
    # v7x (2 TCs, 64 MiB VMEM) and unknown parts: smaller, safe blocks.
    return 8 * _MIB, 2


def _make_sum_readout_kernel(n, tile_n, tile_d, blocks_per_split, first_masked_block):
    """Grid = (n_split, num_d, blocks_per_split):
    axis 0: "parallel" core split of the node range (feeds the 2nd TC on v7x)
    axis 1: "parallel" D tiles
    axis 2: "arbitrary" reduction over N blocks (innermost)
    """
    chunk = min(_CHUNK_ROWS, tile_n)
    assert tile_n % chunk == 0 and chunk % 8 == 0
    n_chunks = tile_n // chunk
    c_sub = chunk // 8

    def kernel(x_ref, o_ref):
        c = pl.program_id(0)  # core split
        i = pl.program_id(2)  # N reduction step

        # The output block index (c, j) does not depend on i, so o_ref stays
        # resident across the whole reduction chain -> it IS the f32 accumulator.
        @pl.when(i == 0)
        def _():
            o_ref[...] = jnp.zeros_like(o_ref)

        global_blk = c * blocks_per_split + i

        def add_chunk(off):
            x = x_ref[pl.ds(off, chunk), :].astype(jnp.float32)
            o_ref[...] += jnp.sum(x.reshape(c_sub, 8, tile_d), axis=0)

        def accum_plain():
            if n_chunks == 1:
                add_chunk(0)
            else:
                def body(kk, carry):
                    add_chunk(pl.multiple_of(kk * chunk, chunk))
                    return carry
                lax.fori_loop(0, n_chunks, body, 0)

        def accum_masked():
            # rows_left <= 0 means this is a clamped, fully-padded duplicate
            # block; everything is masked to exactly zero.
            rows_left = n - global_blk * tile_n
            # Lane-narrow row ids; the select broadcasts along lanes (cheap).
            row_ids = lax.broadcasted_iota(jnp.int32, (chunk, 1), 0)

            def add_chunk_masked(off):
                x = x_ref[pl.ds(off, chunk), :].astype(jnp.float32)
                # jnp.where (select), NOT multiply-by-zero: OOB garbage may be NaN.
                x = jnp.where(row_ids < (rows_left - off), x, 0.0)
                o_ref[...] += jnp.sum(x.reshape(c_sub, 8, tile_d), axis=0)

            if n_chunks == 1:
                add_chunk_masked(0)
            else:
                def body(kk, carry):
                    add_chunk_masked(pl.multiple_of(kk * chunk, chunk))
                    return carry
                lax.fori_loop(0, n_chunks, body, 0)

        if first_masked_block is None:
            accum_plain()  # no ragged tail, no padded blocks
        elif first_masked_block == 0:
            accum_masked()  # single (ragged) block
        else:
            # Masking only runs on the last block(s); every other step is a
            # pure unmasked accumulate.
            @pl.when(global_blk < first_masked_block)
            def _():
                accum_plain()

            @pl.when(global_blk >= first_masked_block)
            def _():
                accum_masked()

    return kernel


def sum_readout(embeddings: jax.Array, *, block_bytes=None, force_kernel=False,
                small_bytes=256 * 1024) -> jax.Array:
    """Pallas TPU implementation of SumReadOut.forward (sum over axis 0)."""
    if embeddings.ndim == 0:
        return embeddings
    if embeddings.ndim == 1:
        return jnp.sum(embeddings, axis=0)
    if embeddings.ndim > 2:
        flat = embeddings.reshape(embeddings.shape[0], -1)
        out = sum_readout(flat, block_bytes=block_bytes,
                          force_kernel=force_kernel, small_bytes=small_bytes)
        return out.reshape(embeddings.shape[1:])

    n, d = embeddings.shape
    dtype = embeddings.dtype
    itemsize = jnp.dtype(dtype).itemsize

    # Tiny readouts: fixed pallas_call / grid overhead dominates -> XLA's fused
    # reduce is strictly faster on every generation.
    if not force_kernel and n * d * itemsize < small_bytes:
        return jnp.sum(embeddings, axis=0)

    hint_block_bytes, num_tc = _tpu_hints()
    if block_bytes is None:
        block_bytes = hint_block_bytes

    # D tiling only with an exact divisor so the accumulator never sees
    # out-of-bounds columns; otherwise the block covers the full D extent.
    tile_d = d
    if d >= 1024:
        for cand in (512, 256, 128):
            if d % cand == 0:
                tile_d = cand
                break
    num_d = d // tile_d

    # Largest N tile that fits the per-block byte budget (no artificial row
    # cap), rounded to the sublane-packing granule and the in-kernel chunk.
    sub = max(8, 32 // max(itemsize, 1))  # 8 f32 / 16 bf16 / 32 int8
    rows_budget = max(sub, block_bytes // max(1, tile_d * itemsize))
    tile_n = min(rows_budget, pl.cdiv(n, sub) * sub)
    tile_n = max(sub, (tile_n // sub) * sub)
    if tile_n > _CHUNK_ROWS:
        tile_n = (tile_n // _CHUNK_ROWS) * _CHUNK_ROWS

    num_blocks = pl.cdiv(n, tile_n)

    # Split the node range across TensorCores when there is no D parallelism
    # (typical readout widths), so both v7x TCs stream HBM. At most one padded
    # (fully masked, zero-contributing) duplicate block is introduced.
    n_split = 2 if (num_tc >= 2 and num_d == 1 and num_blocks >= 2) else 1
    blocks_per_split = pl.cdiv(num_blocks, n_split)

    ragged = (n % tile_n) != 0
    padded = n_split * blocks_per_split > num_blocks
    if ragged:
        first_masked_block = n // tile_n
    elif padded:
        first_masked_block = num_blocks
    else:
        first_masked_block = None

    kernel = _make_sum_readout_kernel(n, tile_n, tile_d, blocks_per_split,
                                      first_masked_block)

    last_blk = num_blocks - 1

    def in_index_map(c, j, i):
        # Fully-padded blocks clamp onto the last real block; the kernel masks
        # their contribution to exactly zero (rows_left <= 0 there).
        return (jnp.minimum(c * blocks_per_split + i, last_blk), j)

    # Double-buffered input + resident partial-sum output + chunk f32 temps,
    # plus fixed headroom (no hard clamp that could under-provision).
    vmem_needed = (2 * tile_n * tile_d * itemsize
                   + 2 * 8 * tile_d * 4
                   + 2 * min(_CHUNK_ROWS, tile_n) * tile_d * 4)
    vmem_limit = int(min(128 * _MIB, max(32 * _MIB, vmem_needed + 16 * _MIB)))

    partial = pl.pallas_call(
        kernel,
        out_shape=jax.ShapeDtypeStruct((n_split * 8, d), jnp.float32),
        grid_spec=pltpu.PrefetchScalarGridSpec(
            num_scalar_prefetch=0,
            grid=(n_split, num_d, blocks_per_split),
            in_specs=[pl.BlockSpec((tile_n, tile_d), in_index_map)],
            out_specs=pl.BlockSpec((8, tile_d), lambda c, j, i: (c, j)),
        ),
        compiler_params=pltpu.CompilerParams(
            dimension_semantics=("parallel", "parallel", "arbitrary"),
            vmem_limit_bytes=vmem_limit,
        ),
        cost_estimate=pl.CostEstimate(
            flops=n * d,
            transcendentals=0,
            bytes_accessed=n * d * itemsize + n_split * 8 * d * 4,
        ),
    )(embeddings)

    # Final (8 * n_split -> 1) cross-sublane reduce + cast: trivial wrapper op.
    return jnp.sum(partial, axis=0).astype(dtype)


if __name__ == "__main__":
    key = jax.random.PRNGKey(0)
    k1, k2, k3 = jax.random.split(key, 3)

    # 1) Canonical small graph readout (SumReadOut has no parameters).
    #    force_kernel=True so the Pallas path itself is exercised.
    emb = jax.random.normal(k1, (16, 32), dtype=jnp.float32)
    res = sum_readout(emb, force_kernel=True)
    jax.block_until_ready(res)
    ref = jnp.sum(emb, axis=0)
    assert res.shape == ref.shape
    assert jnp.allclose(res, ref, atol=1e-5, rtol=1e-5)

    # 2) Ragged N, multi-block reduction (+ core split on 2-TC chips), f32.
    x2 = jax.random.normal(k2, (1037, 384), dtype=jnp.float32)
    r2 = sum_readout(x2, block_bytes=256 * 1024)  # small blocks -> many steps + masked tail
    jax.block_until_ready(r2)
    e2 = jnp.sum(x2, axis=0)
    assert r2.shape == e2.shape
    assert jnp.allclose(r2, e2, atol=1e-3, rtol=1e-4)

    # 3) bf16 input: exercises chunked f32 accumulation of a non-f32 stream.
    x3 = jax.random.normal(k3, (2050, 256), dtype=jnp.float32).astype(jnp.bfloat16)
    r3 = sum_readout(x3)
    jax.block_until_ready(r3)
    e3 = jnp.sum(x3.astype(jnp.float32), axis=0)
    assert r3.dtype == jnp.bfloat16
    assert jnp.allclose(r3.astype(jnp.float32), e3, atol=2.0, rtol=2e-2)

    print("KERNEL_OK")
</pallas_src>

<mosaic_0001>
module attributes {stable_mosaic.version = 11 : i64} {
  func.func @kernel(%arg0: i32, %arg1: i32, %arg2: i32, %arg3: memref<16x32xf32, #tpu.memory_space<vmem>>, %arg4: memref<8x32xf32, #tpu.memory_space<vmem>>) attributes {dimension_semantics = [#tpu.dimension_semantics<parallel>, #tpu.dimension_semantics<parallel>, #tpu.dimension_semantics<arbitrary>], iteration_bounds = array<i64: 1, 1, 1>, scalar_prefetch = 0 : i64, scratch_operands = 0 : i64, tpu.core_type = #tpu.core_type<tc>, window_params = [{transform_indices = @transform_0, window_bounds = array<i64: 16, 32>}, {transform_indices = @transform_1, window_bounds = array<i64: 8, 32>}]} {
    %c0_i32 = arith.constant 0 : i32
    %0 = arith.cmpi eq, %arg2, %c0_i32 : i32
    %1 = arith.extui %0 : i1 to i32
    %c0_i32_0 = arith.constant 0 : i32
    %2 = arith.cmpi ne, %1, %c0_i32_0 : i32
    scf.if %2 {
      %cst_6 = arith.constant 0.000000e+00 : f32
      %9 = vector.broadcast %cst_6 : f32 to vector<8x32xf32>
      %c0_7 = arith.constant 0 : index
      %c0_8 = arith.constant 0 : index
      %10 = vector.load %arg4[%c0_7, %c0_8] : memref<8x32xf32, #tpu.memory_space<vmem>>, vector<8x32xf32>
      tpu.vector_store %arg4[%c0_7, %c0_8], %9 {strides = array<i32>} : memref<8x32xf32, #tpu.memory_space<vmem>>, vector<8x32xf32>,
    } else {
    }
    %c0 = arith.constant 0 : index
    %c0_1 = arith.constant 0 : index
    %3 = vector.load %arg3[%c0, %c0_1] : memref<16x32xf32, #tpu.memory_space<vmem>>, vector<16x32xf32>
    %c0_2 = arith.constant 0 : index
    %c0_3 = arith.constant 0 : index
    %4 = vector.load %arg4[%c0_2, %c0_3] : memref<8x32xf32, #tpu.memory_space<vmem>>, vector<8x32xf32>
    %5 = vector.shape_cast %3 : vector<16x32xf32> to vector<2x8x32xf32>
    %cst = arith.constant dense<0.000000e+00> : vector<8x32xf32>
    %6 = vector.multi_reduction <add>, %5, %cst [0] : vector<2x8x32xf32> to vector<8x32xf32>
    %7 = arith.addf %4, %6 : vector<8x32xf32>
    %c0_4 = arith.constant 0 : index
    %c0_5 = arith.constant 0 : index
    %8 = vector.load %arg4[%c0_4, %c0_5] : memref<8x32xf32, #tpu.memory_space<vmem>>, vector<8x32xf32>
    tpu.vector_store %arg4[%c0_4, %c0_5], %7 {strides = array<i32>} : memref<8x32xf32, #tpu.memory_space<vmem>>, vector<8x32xf32>,
    return
  }
  func.func @transform_0(%arg0: i32, %arg1: i32, %arg2: i32) -> (i32, i32) {
    %c1_i32 = arith.constant 1 : i32
    %0 = arith.muli %arg0, %c1_i32 : i32
    %1 = arith.addi %0, %arg2 : i32
    %c0_i32 = arith.constant 0 : i32
    %2 = arith.minsi %1, %c0_i32 : i32
    %c0_i32_0 = arith.constant 0 : i32
    return %2, %arg1 : i32, i32
  }
  func.func @transform_1(%arg0: i32, %arg1: i32, %arg2: i32) -> (i32, i32) {
    %c0_i32 = arith.constant 0 : i32
    return %arg0, %arg1 : i32, i32
  }
}

</mosaic_0001>

<llo_original>
// kernel: tpu_custom_call.1
$region0: #{tpu_custom_call.1}
  #allocation0 [shape = 'u32[]', space=smem, size = 0x4, offset = 0x4, fixed_abs, tag = 'smem constant byte address 0x4 - core index']
  #allocation1 [shape = 'u32[144,128]{1,0:T(1,128)}', space=vmem, size = 0x12000, scoped, tag = 'internal scratch']
  %s0 = inlined_call_operand.hbm [shape: f32[16,32], index: 0, kind: input, shape index: {}]
  %s1 = inlined_call_operand.hbm [shape: f32[8,32], index: 1, kind: output, shape index: {}]
  %s2 = sld [smem:[#allocation0]]
  $region22: #{tpu_custom_call.1} parent=0
    _
  %s4 = ssub.s32 1, %s2
  %s5 = scalar_select 0, %s4, %s2
  $region1: #{tpu_custom_call.1} parent=0
    #allocation2 [shape = 'u8[8192]{0}', space=vmem, size = 0x2000, scoped, tag = 'input window, operand 0, single buffered']
    #allocation3 [shape = 's32[1]{0}', space=sflag, size = 0x4, scoped, tag = 'scoped memory for tpu_custom_call.1']
    #allocation4 [shape = 's32[1]{0}', space=sflag, size = 0x4, scoped, tag = 'scoped memory for tpu_custom_call.1']
    #allocation5 [shape = 'u8[4096]{0}', space=vmem, size = 0x1000, scoped, tag = 'output window, operand 0, single buffered']
    %6 = vsyncpa [#allocation3], 0
    %7 = vsyncpa [#allocation4], 0
    // Predicated region
    $region2: #{tpu_custom_call.1} parent=1 // pred_check
      _
    $region3: #{tpu_custom_call.1} parent=1 // pred_check_branch
      %9 = sbr.rel (0) target = $region5
    $region4: #{tpu_custom_call.1} parent=1 // pred_region
      %s10 = sadd.s32 0, 0
      %p11 = scmp.lt.s32.totalorder %s10, 0
      %s12 = scalar_select %p11, %s10, 0
      %s13 = smul.u32 2, %s12
      %s15 = ssub.s32 256, 256
      %16 = vsyncadd [#allocation3], %s15
      %s17 = smul.addr %s13, 128
      %s18 = scalar_lea.hbm %s0, %s17
      %s19 = sshll.u32 [#allocation2], 4
      %s20 = int_to_ptr.vmem [resolvable:$true] %s19
      %25 = dma.hbm_to_vmem [thread:$0]  %s18, 256, %s20, [#allocation3], 128, 128, 8
    $region5: #{tpu_custom_call.1} parent=1 // pred_fallthru
      _
    // Predicated region
    $region6: #{tpu_custom_call.1} parent=1 // pred_check
      _
    $region7: #{tpu_custom_call.1} parent=1 // pred_check_branch
      %27 = sbr.rel (0) target = $region9
    $region8: #{tpu_custom_call.1} parent=1 // pred_region
      %28 = dma.done [#allocation3], 256
    $region9: #{tpu_custom_call.1} parent=1 // pred_fallthru
      _
    %s29 = sadd.s32 0, 0
    %p30 = scmp.lt.s32.totalorder %s29, 0
    %s31 = scalar_select %p30, %s29, 0
    %s32 = smul.u32 2, %s31
    %p33 = scmp.eq.s32.totalorder 0, 0
    // Predicated region
    $region10: #{tpu_custom_call.1} parent=1 // pred_check
      %p34 = pneg %p33
    $region11: #{tpu_custom_call.1} parent=1 // pred_check_branch
      %36 = sbr.rel (%p34) target = $region13
    $region12: #{tpu_custom_call.1} parent=1 // pred_region
      %vm37 = vcmask 261120
      %38 = vst.msk [vmem:[#allocation5] sm:$0xff] %vm37, 0.0
    $region13: #{tpu_custom_call.1} parent=1 // pred_fallthru
      _
    %v39 = vld [vmem:[#allocation2] sm:$0xff]
    %v40 = vld [vmem:[#allocation2 + $0x8] sm:$0xff]
    %v41 = vld [vmem:[#allocation5] sm:$0xff]
    %vm42 = vcmask 261120
    %v43 = vsel %vm42, %v39, 0.0
    %v44 = vsel %vm42, %v40, 0.0
    %v45 = vadd.f32 %v43, %v44
    %v46 = vadd.f32 %v41, %v45
    %47 = vst.msk [vmem:[#allocation5] sm:$0xff] %vm42, %v46
    // Predicated region
    $region14: #{tpu_custom_call.1} parent=1 // pred_check
      _
    $region15: #{tpu_custom_call.1} parent=1 // pred_check_branch
      %49 = sbr.rel (0) target = $region17
    $region16: #{tpu_custom_call.1} parent=1 // pred_region
      %s51 = ssub.s32 128, 128
      %52 = vsyncadd [#allocation4], %s51
      %s54 = sshll.u32 [#allocation5], 4
      %s55 = int_to_ptr.vmem [resolvable:$true] %s54
      %57 = dma.vmem_to_hbm [thread:$0]  %s55, 128, %s1, [#allocation4]
    $region17: #{tpu_custom_call.1} parent=1 // pred_fallthru
      _
    // Predicated region
    $region18: #{tpu_custom_call.1} parent=1 // pred_check
      _
    $region19: #{tpu_custom_call.1} parent=1 // pred_check_branch
      %59 = sbr.rel (0) target = $region21
    $region20: #{tpu_custom_call.1} parent=1 // pred_region
      %60 = dma.done [#allocation4], 128
    $region21: #{tpu_custom_call.1} parent=1 // pred_fallthru
      _
    %61 = vsyncpa [#allocation3], 1
    %62 = vsyncpa [#allocation4], 1

</llo_original>
